<compile_context>
chip_gen: v7x
topology: tpu7x:2x2x1
jax: 0.10.0
libtpu: 0.0.40
codegen_flags: <defaults>
</compile_context>

<pallas_src>
import functools

import jax
import jax.numpy as jnp
import numpy as np
from jax.experimental import pallas as pl
from jax.experimental.pallas import tpu as pltpu

BN_EPS = 1e-5
LANE = 128


def _round_up(n, m):
    return ((n + m - 1) // m) * m


# ----------------------------- Fused Pallas kernel ------------------------- #

def _fused_generator_kernel(x_ref, *rest, n_layers, noise_dim, seg_dims,
                            seg_offsets, k_pads):
    """rest = [w0,b0,gamma0,beta0, ..., wf,bf, out_ref, act_ref].

    act_ref is a persistent VMEM buffer of shape (batch, total_pad) holding the packed
    concatenated activation [ x | o_0 | o_1 | ... ].  Weights were permuted at prep time
    to match this packed layout, so semantics equal PyTorch's cat([out, input], dim=1).
    """
    layer_refs = rest[: 4 * n_layers]
    wf_ref, bf_ref, out_ref, act_ref = rest[4 * n_layers:]

    # Zero the packed buffer once: any column that is read before it is written (the
    # rounded-up K tail of each prefix read, and the final pad columns) must be an
    # exact zero; the matching weight rows are zero as well.
    act_ref[...] = jnp.zeros_like(act_ref)
    # Noise input goes into segment 0 (masked store of noise_dim lanes).
    act_ref[:, :noise_dim] = x_ref[...]

    for li in range(n_layers):                       # static unroll over layers
        w_ref, b_ref, gamma_ref, beta_ref = layer_refs[4 * li: 4 * li + 4]
        d_out = seg_dims[li]
        off = seg_offsets[li]
        k_pad = k_pads[li]

        # Lane-dense prefix read (K rounded up to 128).  Cast LHS to the weight dtype
        # (bf16 in the fast path) so the MXU uses its native bf16 route; accumulation
        # stays f32 via preferred_element_type.
        lhs = act_ref[:, :k_pad].astype(w_ref.dtype)
        h = jnp.dot(lhs, w_ref[...], preferred_element_type=jnp.float32) + b_ref[...]

        # BatchNorm1d (training mode: batch mean, biased batch variance), folded into a
        # single scale/shift; one-pass variance; rsqrt rides the EUP slot.
        mean = jnp.mean(h, axis=0, keepdims=True)
        m2 = jnp.mean(h * h, axis=0, keepdims=True)
        var = jnp.maximum(m2 - mean * mean, 0.0)     # clamp tiny fp-cancellation residue
        scale = gamma_ref[...] * jax.lax.rsqrt(var + BN_EPS)
        shift = beta_ref[...] - mean * scale
        out = jnp.maximum(h * scale + shift, 0.0)

        # Packed (masked) store of the new segment -- written exactly once.
        act_ref[:, off: off + d_out] = out

    # Final Linear over the full packed activation (lane-dense K and lane-dense output).
    lhs = act_ref[...].astype(wf_ref.dtype)
    out_ref[...] = (
        jnp.dot(lhs, wf_ref[...], preferred_element_type=jnp.float32) + bf_ref[...]
    )


def _full_spec(shape):
    # Whole-array block (trivial grid); everything fits comfortably in VMEM.
    return pl.BlockSpec(shape, lambda i: (0,) * len(shape))


def generator_forward_fused(fused_params, meta, x):
    batch = x.shape[0]
    total_pad = meta["total_pad"]
    data_pad = meta["data_pad"]
    n_layers = len(meta["seg_dims"])

    flat_inputs = [x.astype(jnp.float32)]
    for (w, b, g, be) in fused_params["layers"]:
        flat_inputs += [w, b, g, be]
    flat_inputs += [fused_params["final_w"], fused_params["final_b"]]

    kernel = functools.partial(
        _fused_generator_kernel,
        n_layers=n_layers,
        noise_dim=meta["noise_dim"],
        seg_dims=meta["seg_dims"],
        seg_offsets=meta["seg_offsets"],
        k_pads=meta["k_pads"],
    )

    # Explicit VMEM budget: scratch + (conservatively double-buffered) inputs/output.
    scratch_bytes = batch * total_pad * 4
    in_bytes = sum(int(np.prod(a.shape)) * a.dtype.itemsize for a in flat_inputs)
    out_bytes = batch * data_pad * 4
    est = scratch_bytes + 2 * (in_bytes + out_bytes)
    assert est <= 60 * 1024 * 1024, (
        "working set exceeds v7x VMEM (64 MiB); batch-tile the call "
        "(see TODO on two-pass BatchNorm)")
    vmem_limit = int(min(max(2 * est, 32 * 1024 * 1024), 64 * 1024 * 1024))

    out_padded = pl.pallas_call(
        kernel,
        grid=(1,),
        out_shape=jax.ShapeDtypeStruct((batch, data_pad), jnp.float32),
        in_specs=[_full_spec(a.shape) for a in flat_inputs],
        out_specs=_full_spec((batch, data_pad)),
        scratch_shapes=[pltpu.VMEM((batch, total_pad), jnp.float32)],
        compiler_params=pltpu.CompilerParams(
            dimension_semantics=("arbitrary",),
            vmem_limit_bytes=vmem_limit,
        ),
    )(*flat_inputs)

    # Callers that consume the padded (batch, data_pad) layout can skip this slice.
    return out_padded[:, : meta["data_dim"]]


# --------------------- Parameter init (PyTorch layout) --------------------- #

def init_generator_params(key, noise_dim, generator_dim, data_dim):
    """PyTorch-default-style init; weights stored in PyTorch concat ordering."""
    params = {"residuals": []}
    dim = noise_dim
    for item in generator_dim:
        key, kw, kb = jax.random.split(key, 3)
        bound = 1.0 / np.sqrt(dim)
        w = jax.random.uniform(kw, (dim, item), jnp.float32, -bound, bound)
        b = jax.random.uniform(kb, (1, item), jnp.float32, -bound, bound)
        gamma = jnp.ones((1, item), jnp.float32)
        beta = jnp.zeros((1, item), jnp.float32)
        params["residuals"].append((w, b, gamma, beta))
        dim += item
    key, kw, kb = jax.random.split(key, 3)
    bound = 1.0 / np.sqrt(dim)
    params["final_w"] = jax.random.uniform(kw, (dim, data_dim), jnp.float32, -bound, bound)
    params["final_b"] = jax.random.uniform(kb, (1, data_dim), jnp.float32, -bound, bound)
    return params


# ---- Prep: permute rows to packed buffer order + minimal 128-lane padding --- #

def prepare_fused_params(params, noise_dim, generator_dim, data_dim,
                         weight_dtype=jnp.bfloat16):
    L = len(generator_dim)

    # Packed buffer layout: [ x | o_0 | o_1 | ... ] back-to-back (no per-segment lane
    # padding).  Only per-layer K reads and the output N are rounded up to 128.
    seg_offsets = []
    off = noise_dim
    for d in generator_dim:
        seg_offsets.append(off)
        off += d
    total_real = off
    total_pad = _round_up(total_real, LANE)
    data_pad = _round_up(data_dim, LANE)

    buf_off = {("x", None): 0}
    for j in range(L):
        buf_off[("o", j)] = seg_offsets[j]

    def remap_rows(w_pt, pt_segments, n_rows_pad, n_cols_real, n_cols_pad):
        """PyTorch row ordering -> packed buffer row ordering, zero padded."""
        w_pt = np.asarray(w_pt, np.float32)
        w_p = np.zeros((n_rows_pad, n_cols_pad), np.float32)
        src = 0
        for seg in pt_segments:
            kind, j = seg
            width = noise_dim if kind == "x" else generator_dim[j]
            dst = buf_off[seg]
            w_p[dst:dst + width, :n_cols_real] = w_pt[src:src + width, :]
            src += width
        return w_p

    layers = []
    k_pads = []
    for li, (w, b, gamma, beta) in enumerate(params["residuals"]):
        d_out = generator_dim[li]
        prefix_real = noise_dim + sum(generator_dim[:li])
        k_pad = _round_up(prefix_real, LANE)
        k_pads.append(k_pad)
        # PyTorch input ordering at layer li: [o_{li-1}, ..., o_0, x]
        pt_segments = [("o", j) for j in range(li - 1, -1, -1)] + [("x", None)]
        w_p = remap_rows(w, pt_segments, k_pad, d_out, d_out)
        # Guardrail: rows beyond the real prefix must be exact zeros (they face the
        # not-yet-written / zeroed tail of the activation buffer).
        assert not np.any(w_p[prefix_real:, :])
        layers.append((
            jnp.asarray(w_p, weight_dtype),
            jnp.asarray(np.asarray(b, np.float32).reshape(1, d_out)),
            jnp.asarray(np.asarray(gamma, np.float32).reshape(1, d_out)),
            jnp.asarray(np.asarray(beta, np.float32).reshape(1, d_out)),
        ))

    pt_segments = [("o", j) for j in range(L - 1, -1, -1)] + [("x", None)]
    wf_p = remap_rows(params["final_w"], pt_segments, total_pad, data_dim, data_pad)
    # Guardrail: padded rows/cols of the final weight must be exact zeros.
    assert not np.any(wf_p[total_real:, :]) and not np.any(wf_p[:, data_dim:])
    bf_p = np.zeros((1, data_pad), np.float32)
    bf_p[:, :data_dim] = np.asarray(params["final_b"], np.float32)

    meta = dict(
        noise_dim=noise_dim,
        seg_dims=tuple(generator_dim),
        seg_offsets=tuple(seg_offsets),
        k_pads=tuple(k_pads),
        total_pad=total_pad,
        data_dim=data_dim,
        data_pad=data_pad,
    )
    fused = dict(layers=layers,
                 final_w=jnp.asarray(wf_p, weight_dtype),
                 final_b=jnp.asarray(bf_p))
    return fused, meta


# ------------------ Pure-JAX reference (PyTorch semantics) ------------------ #

def generator_forward_ref(params, x):
    h = x
    for (w, b, gamma, beta) in params["residuals"]:
        lin = h @ w + b
        mean = jnp.mean(lin, axis=0, keepdims=True)
        var = jnp.mean(jnp.square(lin - mean), axis=0, keepdims=True)
        bn = (lin - mean) / jnp.sqrt(var + BN_EPS) * gamma + beta
        h = jnp.concatenate([jnp.maximum(bn, 0.0), h], axis=1)  # cat([out, input])
    return h @ params["final_w"] + params["final_b"]


if __name__ == "__main__":
    noise_dim = 32
    generator_dim = (32, 64)
    data_dim = 24
    batch = 8          # real batch rows are never padded -> BN stats are exact

    key = jax.random.PRNGKey(0)
    key, k_in = jax.random.split(key)
    x = jax.random.normal(k_in, (batch, noise_dim), jnp.float32)

    params = init_generator_params(key, noise_dim, generator_dim, data_dim)
    ref = generator_forward_ref(params, x)

    # Exact-semantics check: f32 weights, must match the PyTorch-style reference to 1e-4.
    fused32, meta32 = prepare_fused_params(params, noise_dim, generator_dim, data_dim,
                                           weight_dtype=jnp.float32)
    out32 = jax.block_until_ready(generator_forward_fused(fused32, meta32, x))
    np.testing.assert_allclose(np.asarray(out32), np.asarray(ref), rtol=1e-4, atol=1e-4)

    # Fast path: bf16 weights (halved weight DMA, native MXU bf16 route).  BN statistics
    # stay in f32; the loose tolerance only reflects bf16 matmul rounding amplified by
    # the small-batch (N=8) BatchNorm statistics — exactness is covered by the f32 run.
    fused16, meta16 = prepare_fused_params(params, noise_dim, generator_dim, data_dim,
                                           weight_dtype=jnp.bfloat16)
    out16 = jax.block_until_ready(generator_forward_fused(fused16, meta16, x))
    np.testing.assert_allclose(np.asarray(out16), np.asarray(ref), rtol=1e-1, atol=1e-1)

    assert out32.shape == (batch, data_dim) and out16.shape == (batch, data_dim)
    print("KERNEL_OK")
</pallas_src>

<mosaic_0001>
module attributes {stable_mosaic.version = 11 : i64} {
  func.func @_fused_generator_kernel(%arg0: i32, %arg1: memref<8x32xf32, #tpu.memory_space<vmem>>, %arg2: memref<128x32xf32, #tpu.memory_space<vmem>>, %arg3: memref<1x32xf32, #tpu.memory_space<vmem>>, %arg4: memref<1x32xf32, #tpu.memory_space<vmem>>, %arg5: memref<1x32xf32, #tpu.memory_space<vmem>>, %arg6: memref<128x64xf32, #tpu.memory_space<vmem>>, %arg7: memref<1x64xf32, #tpu.memory_space<vmem>>, %arg8: memref<1x64xf32, #tpu.memory_space<vmem>>, %arg9: memref<1x64xf32, #tpu.memory_space<vmem>>, %arg10: memref<128x128xf32, #tpu.memory_space<vmem>>, %arg11: memref<1x128xf32, #tpu.memory_space<vmem>>, %arg12: memref<8x128xf32, #tpu.memory_space<vmem>>, %arg13: memref<8x128xf32, #tpu.memory_space<vmem>>) attributes {dimension_semantics = [#tpu.dimension_semantics<arbitrary>], iteration_bounds = array<i64: 1>, scalar_prefetch = 0 : i64, scratch_operands = 1 : i64, tpu.core_type = #tpu.core_type<tc>, window_params = [{pipeline_mode = #tpu.pipeline_mode<synchronous>, transform_indices = @transform_0, window_bounds = array<i64: 8, 32>}, {pipeline_mode = #tpu.pipeline_mode<synchronous>, transform_indices = @transform_1, window_bounds = array<i64: 128, 32>}, {pipeline_mode = #tpu.pipeline_mode<synchronous>, transform_indices = @transform_2, window_bounds = array<i64: 1, 32>}, {pipeline_mode = #tpu.pipeline_mode<synchronous>, transform_indices = @transform_3, window_bounds = array<i64: 1, 32>}, {pipeline_mode = #tpu.pipeline_mode<synchronous>, transform_indices = @transform_4, window_bounds = array<i64: 1, 32>}, {pipeline_mode = #tpu.pipeline_mode<synchronous>, transform_indices = @transform_5, window_bounds = array<i64: 128, 64>}, {pipeline_mode = #tpu.pipeline_mode<synchronous>, transform_indices = @transform_6, window_bounds = array<i64: 1, 64>}, {pipeline_mode = #tpu.pipeline_mode<synchronous>, transform_indices = @transform_7, window_bounds = array<i64: 1, 64>}, {pipeline_mode = #tpu.pipeline_mode<synchronous>, transform_indices = @transform_8, window_bounds = array<i64: 1, 64>}, {pipeline_mode = #tpu.pipeline_mode<synchronous>, transform_indices = @transform_9, window_bounds = array<i64: 128, 128>}, {pipeline_mode = #tpu.pipeline_mode<synchronous>, transform_indices = @transform_10, window_bounds = array<i64: 1, 128>}, {pipeline_mode = #tpu.pipeline_mode<synchronous>, transform_indices = @transform_11, window_bounds = array<i64: 8, 128>}]} {
    %cst = arith.constant 0.000000e+00 : f32
    %0 = vector.broadcast %cst : f32 to vector<8x128xf32>
    %c0 = arith.constant 0 : index
    %c0_0 = arith.constant 0 : index
    %1 = vector.load %arg13[%c0, %c0_0] : memref<8x128xf32, #tpu.memory_space<vmem>>, vector<8x128xf32>
    tpu.vector_store %arg13[%c0, %c0_0], %0 {strides = array<i32>} : memref<8x128xf32, #tpu.memory_space<vmem>>, vector<8x128xf32>,
    %c0_1 = arith.constant 0 : index
    %c0_2 = arith.constant 0 : index
    %2 = vector.load %arg1[%c0_1, %c0_2] : memref<8x32xf32, #tpu.memory_space<vmem>>, vector<8x32xf32>
    %c0_3 = arith.constant 0 : index
    %c0_4 = arith.constant 0 : index
    %3 = vector.load %arg13[%c0_3, %c0_4] : memref<8x128xf32, #tpu.memory_space<vmem>>, vector<8x32xf32>
    tpu.vector_store %arg13[%c0_3, %c0_4], %2 {strides = array<i32>} : memref<8x128xf32, #tpu.memory_space<vmem>>, vector<8x32xf32>,
    %c0_5 = arith.constant 0 : index
    %c0_6 = arith.constant 0 : index
    %4 = vector.load %arg13[%c0_5, %c0_6] : memref<8x128xf32, #tpu.memory_space<vmem>>, vector<8x128xf32>
    %c0_7 = arith.constant 0 : index
    %c0_8 = arith.constant 0 : index
    %5 = vector.load %arg2[%c0_7, %c0_8] : memref<128x32xf32, #tpu.memory_space<vmem>>, vector<128x32xf32>
    %cst_9 = arith.constant dense<0.000000e+00> : vector<8x32xf32>
    %6 = tpu.matmul %4, %5, %cst_9 {dimension_numbers = #tpu.dot_dimension_numbers<[1], [0], [0], [1], [0, 0, 1, 1], [], []>} : vector<8x128xf32>, vector<128x32xf32>, vector<8x32xf32> -> vector<8x32xf32>
    %c0_10 = arith.constant 0 : index
    %c0_11 = arith.constant 0 : index
    %7 = vector.load %arg3[%c0_10, %c0_11] : memref<1x32xf32, #tpu.memory_space<vmem>>, vector<1x32xf32>
    %8 = vector.broadcast %7 : vector<1x32xf32> to vector<8x32xf32>
    %9 = arith.addf %6, %8 : vector<8x32xf32>
    %cst_12 = arith.constant dense<0.000000e+00> : vector<32xf32>
    %10 = vector.multi_reduction <add>, %9, %cst_12 [0] : vector<8x32xf32> to vector<32xf32>
    %11 = vector.shape_cast %10 : vector<32xf32> to vector<1x32xf32>
    %cst_13 = arith.constant 8.000000e+00 : f32
    %12 = vector.broadcast %cst_13 : f32 to vector<1x32xf32>
    %13 = arith.divf %11, %12 : vector<1x32xf32>
    %14 = arith.mulf %9, %9 : vector<8x32xf32>
    %cst_14 = arith.constant dense<0.000000e+00> : vector<32xf32>
    %15 = vector.multi_reduction <add>, %14, %cst_14 [0] : vector<8x32xf32> to vector<32xf32>
    %16 = vector.shape_cast %15 : vector<32xf32> to vector<1x32xf32>
    %cst_15 = arith.constant 8.000000e+00 : f32
    %17 = vector.broadcast %cst_15 : f32 to vector<1x32xf32>
    %18 = arith.divf %16, %17 : vector<1x32xf32>
    %19 = arith.mulf %13, %13 : vector<1x32xf32>
    %20 = arith.subf %18, %19 : vector<1x32xf32>
    %cst_16 = arith.constant 0.000000e+00 : f32
    %21 = vector.broadcast %cst_16 : f32 to vector<1x32xf32>
    %22 = arith.maximumf %20, %21 : vector<1x32xf32>
    %c0_17 = arith.constant 0 : index
    %c0_18 = arith.constant 0 : index
    %23 = vector.load %arg4[%c0_17, %c0_18] : memref<1x32xf32, #tpu.memory_space<vmem>>, vector<1x32xf32>
    %cst_19 = arith.constant 9.99999974E-6 : f32
    %24 = vector.broadcast %cst_19 : f32 to vector<1x32xf32>
    %25 = arith.addf %22, %24 : vector<1x32xf32>
    %26 = math.rsqrt %25 : vector<1x32xf32>
    %27 = arith.mulf %23, %26 : vector<1x32xf32>
    %c0_20 = arith.constant 0 : index
    %c0_21 = arith.constant 0 : index
    %28 = vector.load %arg5[%c0_20, %c0_21] : memref<1x32xf32, #tpu.memory_space<vmem>>, vector<1x32xf32>
    %29 = arith.mulf %13, %27 : vector<1x32xf32>
    %30 = arith.subf %28, %29 : vector<1x32xf32>
    %31 = vector.broadcast %27 : vector<1x32xf32> to vector<8x32xf32>
    %32 = arith.mulf %9, %31 : vector<8x32xf32>
    %33 = vector.broadcast %30 : vector<1x32xf32> to vector<8x32xf32>
    %34 = arith.addf %32, %33 : vector<8x32xf32>
    %cst_22 = arith.constant 0.000000e+00 : f32
    %35 = vector.broadcast %cst_22 : f32 to vector<8x32xf32>
    %36 = arith.maximumf %34, %35 : vector<8x32xf32>
    %c0_23 = arith.constant 0 : index
    %c32 = arith.constant 32 : index
    %37 = vector.load %arg13[%c0_23, %c32] : memref<8x128xf32, #tpu.memory_space<vmem>>, vector<8x32xf32>
    tpu.vector_store %arg13[%c0_23, %c32], %36 {strides = array<i32>} : memref<8x128xf32, #tpu.memory_space<vmem>>, vector<8x32xf32>,
    %c0_24 = arith.constant 0 : index
    %c0_25 = arith.constant 0 : index
    %38 = vector.load %arg13[%c0_24, %c0_25] : memref<8x128xf32, #tpu.memory_space<vmem>>, vector<8x128xf32>
    %c0_26 = arith.constant 0 : index
    %c0_27 = arith.constant 0 : index
    %39 = vector.load %arg6[%c0_26, %c0_27] : memref<128x64xf32, #tpu.memory_space<vmem>>, vector<128x64xf32>
    %cst_28 = arith.constant dense<0.000000e+00> : vector<8x64xf32>
    %40 = tpu.matmul %38, %39, %cst_28 {dimension_numbers = #tpu.dot_dimension_numbers<[1], [0], [0], [1], [0, 0, 1, 1], [], []>} : vector<8x128xf32>, vector<128x64xf32>, vector<8x64xf32> -> vector<8x64xf32>
    %c0_29 = arith.constant 0 : index
    %c0_30 = arith.constant 0 : index
    %41 = vector.load %arg7[%c0_29, %c0_30] : memref<1x64xf32, #tpu.memory_space<vmem>>, vector<1x64xf32>
    %42 = vector.broadcast %41 : vector<1x64xf32> to vector<8x64xf32>
    %43 = arith.addf %40, %42 : vector<8x64xf32>
    %cst_31 = arith.constant dense<0.000000e+00> : vector<64xf32>
    %44 = vector.multi_reduction <add>, %43, %cst_31 [0] : vector<8x64xf32> to vector<64xf32>
    %45 = vector.shape_cast %44 : vector<64xf32> to vector<1x64xf32>
    %cst_32 = arith.constant 8.000000e+00 : f32
    %46 = vector.broadcast %cst_32 : f32 to vector<1x64xf32>
    %47 = arith.divf %45, %46 : vector<1x64xf32>
    %48 = arith.mulf %43, %43 : vector<8x64xf32>
    %cst_33 = arith.constant dense<0.000000e+00> : vector<64xf32>
    %49 = vector.multi_reduction <add>, %48, %cst_33 [0] : vector<8x64xf32> to vector<64xf32>
    %50 = vector.shape_cast %49 : vector<64xf32> to vector<1x64xf32>
    %cst_34 = arith.constant 8.000000e+00 : f32
    %51 = vector.broadcast %cst_34 : f32 to vector<1x64xf32>
    %52 = arith.divf %50, %51 : vector<1x64xf32>
    %53 = arith.mulf %47, %47 : vector<1x64xf32>
    %54 = arith.subf %52, %53 : vector<1x64xf32>
    %cst_35 = arith.constant 0.000000e+00 : f32
    %55 = vector.broadcast %cst_35 : f32 to vector<1x64xf32>
    %56 = arith.maximumf %54, %55 : vector<1x64xf32>
    %c0_36 = arith.constant 0 : index
    %c0_37 = arith.constant 0 : index
    %57 = vector.load %arg8[%c0_36, %c0_37] : memref<1x64xf32, #tpu.memory_space<vmem>>, vector<1x64xf32>
    %cst_38 = arith.constant 9.99999974E-6 : f32
    %58 = vector.broadcast %cst_38 : f32 to vector<1x64xf32>
    %59 = arith.addf %56, %58 : vector<1x64xf32>
    %60 = math.rsqrt %59 : vector<1x64xf32>
    %61 = arith.mulf %57, %60 : vector<1x64xf32>
    %c0_39 = arith.constant 0 : index
    %c0_40 = arith.constant 0 : index
    %62 = vector.load %arg9[%c0_39, %c0_40] : memref<1x64xf32, #tpu.memory_space<vmem>>, vector<1x64xf32>
    %63 = arith.mulf %47, %61 : vector<1x64xf32>
    %64 = arith.subf %62, %63 : vector<1x64xf32>
    %65 = vector.broadcast %61 : vector<1x64xf32> to vector<8x64xf32>
    %66 = arith.mulf %43, %65 : vector<8x64xf32>
    %67 = vector.broadcast %64 : vector<1x64xf32> to vector<8x64xf32>
    %68 = arith.addf %66, %67 : vector<8x64xf32>
    %cst_41 = arith.constant 0.000000e+00 : f32
    %69 = vector.broadcast %cst_41 : f32 to vector<8x64xf32>
    %70 = arith.maximumf %68, %69 : vector<8x64xf32>
    %c0_42 = arith.constant 0 : index
    %c64 = arith.constant 64 : index
    %71 = vector.load %arg13[%c0_42, %c64] : memref<8x128xf32, #tpu.memory_space<vmem>>, vector<8x64xf32>
    tpu.vector_store %arg13[%c0_42, %c64], %70 {strides = array<i32>} : memref<8x128xf32, #tpu.memory_space<vmem>>, vector<8x64xf32>,
    %c0_43 = arith.constant 0 : index
    %c0_44 = arith.constant 0 : index
    %72 = vector.load %arg13[%c0_43, %c0_44] : memref<8x128xf32, #tpu.memory_space<vmem>>, vector<8x128xf32>
    %c0_45 = arith.constant 0 : index
    %c0_46 = arith.constant 0 : index
    %73 = vector.load %arg10[%c0_45, %c0_46] : memref<128x128xf32, #tpu.memory_space<vmem>>, vector<128x128xf32>
    %cst_47 = arith.constant dense<0.000000e+00> : vector<8x128xf32>
    %74 = tpu.matmul %72, %73, %cst_47 {dimension_numbers = #tpu.dot_dimension_numbers<[1], [0], [0], [1], [0, 0, 1, 1], [], []>} : vector<8x128xf32>, vector<128x128xf32>, vector<8x128xf32> -> vector<8x128xf32>
    %c0_48 = arith.constant 0 : index
    %c0_49 = arith.constant 0 : index
    %75 = vector.load %arg11[%c0_48, %c0_49] : memref<1x128xf32, #tpu.memory_space<vmem>>, vector<1x128xf32>
    %76 = vector.broadcast %75 : vector<1x128xf32> to vector<8x128xf32>
    %77 = arith.addf %74, %76 : vector<8x128xf32>
    %c0_50 = arith.constant 0 : index
    %c0_51 = arith.constant 0 : index
    %78 = vector.load %arg12[%c0_50, %c0_51] : memref<8x128xf32, #tpu.memory_space<vmem>>, vector<8x128xf32>
    tpu.vector_store %arg12[%c0_50, %c0_51], %77 {strides = array<i32>} : memref<8x128xf32, #tpu.memory_space<vmem>>, vector<8x128xf32>,
    return
  }
  func.func @transform_0(%arg0: i32) -> (i32, i32) {
    %c0_i32 = arith.constant 0 : i32
    %c0_i32_0 = arith.constant 0 : i32
    %c0_i32_1 = arith.constant 0 : i32
    return %c0_i32, %c0_i32_0 : i32, i32
  }
  func.func @transform_1(%arg0: i32) -> (i32, i32) {
    %c0_i32 = arith.constant 0 : i32
    %c0_i32_0 = arith.constant 0 : i32
    %c0_i32_1 = arith.constant 0 : i32
    return %c0_i32, %c0_i32_0 : i32, i32
  }
  func.func @transform_2(%arg0: i32) -> (i32, i32) {
    %c0_i32 = arith.constant 0 : i32
    %c0_i32_0 = arith.constant 0 : i32
    %c0_i32_1 = arith.constant 0 : i32
    return %c0_i32, %c0_i32_0 : i32, i32
  }
  func.func @transform_3(%arg0: i32) -> (i32, i32) {
    %c0_i32 = arith.constant 0 : i32
    %c0_i32_0 = arith.constant 0 : i32
    %c0_i32_1 = arith.constant 0 : i32
    return %c0_i32, %c0_i32_0 : i32, i32
  }
  func.func @transform_4(%arg0: i32) -> (i32, i32) {
    %c0_i32 = arith.constant 0 : i32
    %c0_i32_0 = arith.constant 0 : i32
    %c0_i32_1 = arith.constant 0 : i32
    return %c0_i32, %c0_i32_0 : i32, i32
  }
  func.func @transform_5(%arg0: i32) -> (i32, i32) {
    %c0_i32 = arith.constant 0 : i32
    %c0_i32_0 = arith.constant 0 : i32
    %c0_i32_1 = arith.constant 0 : i32
    return %c0_i32, %c0_i32_0 : i32, i32
  }
  func.func @transform_6(%arg0: i32) -> (i32, i32) {
    %c0_i32 = arith.constant 0 : i32
    %c0_i32_0 = arith.constant 0 : i32
    %c0_i32_1 = arith.constant 0 : i32
    return %c0_i32, %c0_i32_0 : i32, i32
  }
  func.func @transform_7(%arg0: i32) -> (i32, i32) {
    %c0_i32 = arith.constant 0 : i32
    %c0_i32_0 = arith.constant 0 : i32
    %c0_i32_1 = arith.constant 0 : i32
    return %c0_i32, %c0_i32_0 : i32, i32
  }
  func.func @transform_8(%arg0: i32) -> (i32, i32) {
    %c0_i32 = arith.constant 0 : i32
    %c0_i32_0 = arith.constant 0 : i32
    %c0_i32_1 = arith.constant 0 : i32
    return %c0_i32, %c0_i32_0 : i32, i32
  }
  func.func @transform_9(%arg0: i32) -> (i32, i32) {
    %c0_i32 = arith.constant 0 : i32
    %c0_i32_0 = arith.constant 0 : i32
    %c0_i32_1 = arith.constant 0 : i32
    return %c0_i32, %c0_i32_0 : i32, i32
  }
  func.func @transform_10(%arg0: i32) -> (i32, i32) {
    %c0_i32 = arith.constant 0 : i32
    %c0_i32_0 = arith.constant 0 : i32
    %c0_i32_1 = arith.constant 0 : i32
    return %c0_i32, %c0_i32_0 : i32, i32
  }
  func.func @transform_11(%arg0: i32) -> (i32, i32) {
    %c0_i32 = arith.constant 0 : i32
    %c0_i32_0 = arith.constant 0 : i32
    %c0_i32_1 = arith.constant 0 : i32
    return %c0_i32, %c0_i32_0 : i32, i32
  }
}

</mosaic_0001>

<llo_original>
// kernel: tpu_custom_call.1
$region0: #{tpu_custom_call.1}
  #allocation0 [shape = 'u32[]', space=smem, size = 0x4, offset = 0x4, fixed_abs, tag = 'smem constant byte address 0x4 - core index']
  #allocation1 [shape = 'u32[144,128]{1,0:T(1,128)}', space=vmem, size = 0x12000, scoped, tag = 'internal scratch']
  #allocation2 [shape = 'f32[8,128]{1,0:T(8,128)}', space=vmem, size = 0x1000, scoped, tag = 'scratch operand']
  %s0 = inlined_call_operand.vmem [shape: f32[8,32], index: 0, kind: input, shape index: {}]
  %s1 = inlined_call_operand.vmem [shape: f32[128,32], index: 1, kind: input, shape index: {}]
  %s2 = inlined_call_operand.vmem [shape: f32[1,32], index: 2, kind: input, shape index: {}]
  %s3 = inlined_call_operand.vmem [shape: f32[1,32], index: 3, kind: input, shape index: {}]
  %s4 = inlined_call_operand.vmem [shape: f32[1,32], index: 4, kind: input, shape index: {}]
  %s5 = inlined_call_operand.vmem [shape: f32[128,64], index: 5, kind: input, shape index: {}]
  %s6 = inlined_call_operand.vmem [shape: f32[1,64], index: 6, kind: input, shape index: {}]
  %s7 = inlined_call_operand.vmem [shape: f32[1,64], index: 7, kind: input, shape index: {}]
  %s8 = inlined_call_operand.vmem [shape: f32[1,64], index: 8, kind: input, shape index: {}]
  %s9 = inlined_call_operand.vmem [shape: f32[128,128], index: 9, kind: input, shape index: {}]
  %s10 = inlined_call_operand.vmem [shape: f32[1,128], index: 10, kind: input, shape index: {}]
  %s11 = inlined_call_operand.hbm [shape: f32[8,128], index: 11, kind: output, shape index: {}]
  %s12 = sld [smem:[#allocation0]]
  $region54: #{tpu_custom_call.1} parent=0
    _
  %s14 = ssub.s32 1, %s12
  %s15 = scalar_select 0, %s14, %s12
  $region1: #{tpu_custom_call.1} parent=0
    #allocation3 [shape = 'u8[4096]{0}', space=vmem, size = 0x1000, scoped, tag = 'output window, operand 0, single buffered']
    #allocation4 [shape = 's32[1]{0}', space=sflag, size = 0x4, scoped, tag = 'scoped memory for tpu_custom_call.1']
    %16 = vsyncpa [#allocation4], 0
    // Predicated region
    $region2: #{tpu_custom_call.1} parent=1 // pred_check
      _
    $region3: #{tpu_custom_call.1} parent=1 // pred_check_branch
      %18 = sbr.rel (0) target = $region5
    $region4: #{tpu_custom_call.1} parent=1 // pred_region
      _
    $region5: #{tpu_custom_call.1} parent=1 // pred_fallthru
      _
    // Predicated region
    $region6: #{tpu_custom_call.1} parent=1 // pred_check
      _
    $region7: #{tpu_custom_call.1} parent=1 // pred_check_branch
      %20 = sbr.rel (0) target = $region9
    $region8: #{tpu_custom_call.1} parent=1 // pred_region
      _
    $region9: #{tpu_custom_call.1} parent=1 // pred_fallthru
      _
    // Predicated region
    $region10: #{tpu_custom_call.1} parent=1 // pred_check
      _
    $region11: #{tpu_custom_call.1} parent=1 // pred_check_branch
      %22 = sbr.rel (0) target = $region13
    $region12: #{tpu_custom_call.1} parent=1 // pred_region
      _
    $region13: #{tpu_custom_call.1} parent=1 // pred_fallthru
      _
    // Predicated region
    $region14: #{tpu_custom_call.1} parent=1 // pred_check
      _
    $region15: #{tpu_custom_call.1} parent=1 // pred_check_branch
      %24 = sbr.rel (0) target = $region17
    $region16: #{tpu_custom_call.1} parent=1 // pred_region
      _
    $region17: #{tpu_custom_call.1} parent=1 // pred_fallthru
      _
    // Predicated region
    $region18: #{tpu_custom_call.1} parent=1 // pred_check
      _
    $region19: #{tpu_custom_call.1} parent=1 // pred_check_branch
      %26 = sbr.rel (0) target = $region21
    $region20: #{tpu_custom_call.1} parent=1 // pred_region
      _
    $region21: #{tpu_custom_call.1} parent=1 // pred_fallthru
      _
    // Predicated region
    $region22: #{tpu_custom_call.1} parent=1 // pred_check
      _
    $region23: #{tpu_custom_call.1} parent=1 // pred_check_branch
      %28 = sbr.rel (0) target = $region25
    $region24: #{tpu_custom_call.1} parent=1 // pred_region
      _
    $region25: #{tpu_custom_call.1} parent=1 // pred_fallthru
      _
    // Predicated region
    $region26: #{tpu_custom_call.1} parent=1 // pred_check
      _
    $region27: #{tpu_custom_call.1} parent=1 // pred_check_branch
      %30 = sbr.rel (0) target = $region29
    $region28: #{tpu_custom_call.1} parent=1 // pred_region
      _
    $region29: #{tpu_custom_call.1} parent=1 // pred_fallthru
      _
    // Predicated region
    $region30: #{tpu_custom_call.1} parent=1 // pred_check
      _
    $region31: #{tpu_custom_call.1} parent=1 // pred_check_branch
      %32 = sbr.rel (0) target = $region33
    $region32: #{tpu_custom_call.1} parent=1 // pred_region
      _
    $region33: #{tpu_custom_call.1} parent=1 // pred_fallthru
      _
    // Predicated region
    $region34: #{tpu_custom_call.1} parent=1 // pred_check
      _
    $region35: #{tpu_custom_call.1} parent=1 // pred_check_branch
      %34 = sbr.rel (0) target = $region37
    $region36: #{tpu_custom_call.1} parent=1 // pred_region
      _
    $region37: #{tpu_custom_call.1} parent=1 // pred_fallthru
      _
    // Predicated region
    $region38: #{tpu_custom_call.1} parent=1 // pred_check
      _
    $region39: #{tpu_custom_call.1} parent=1 // pred_check_branch
      %36 = sbr.rel (0) target = $region41
    $region40: #{tpu_custom_call.1} parent=1 // pred_region
      _
    $region41: #{tpu_custom_call.1} parent=1 // pred_fallthru
      _
    // Predicated region
    $region42: #{tpu_custom_call.1} parent=1 // pred_check
      _
    $region43: #{tpu_custom_call.1} parent=1 // pred_check_branch
      %38 = sbr.rel (0) target = $region45
    $region44: #{tpu_custom_call.1} parent=1 // pred_region
      _
    $region45: #{tpu_custom_call.1} parent=1 // pred_fallthru
      _
    %39 = vst [vmem:[#allocation2] sm:$0xff] 0.0
    %v40 = vld [vmem:[%s0] sm:$0xff]
    %vm41 = vcmask 261120
    %42 = vst.msk [vmem:[#allocation2] sm:$0xff] %vm41, %v40
    %v43 = vld [vmem:[#allocation2] sm:$0xff]
    %v44 = vld [vmem:[%s1] sm:$0xff]
    %v45 = vld [vmem:[%s1 + $0x8] sm:$0xff]
    %v46 = vld [vmem:[%s1 + $0x10] sm:$0xff]
    %v47 = vld [vmem:[%s1 + $0x18] sm:$0xff]
    %v48 = vld [vmem:[%s1 + $0x20] sm:$0xff]
    %v49 = vld [vmem:[%s1 + $0x28] sm:$0xff]
    %v50 = vld [vmem:[%s1 + $0x30] sm:$0xff]
    %v51 = vld [vmem:[%s1 + $0x38] sm:$0xff]
    %v52 = vld [vmem:[%s1 + $0x40] sm:$0xff]
    %v53 = vld [vmem:[%s1 + $0x48] sm:$0xff]
    %v54 = vld [vmem:[%s1 + $0x50] sm:$0xff]
    %v55 = vld [vmem:[%s1 + $0x58] sm:$0xff]
    %v56 = vld [vmem:[%s1 + $0x60] sm:$0xff]
    %v57 = vld [vmem:[%s1 + $0x68] sm:$0xff]
    %v58 = vld [vmem:[%s1 + $0x70] sm:$0xff]
    %v59 = vld [vmem:[%s1 + $0x78] sm:$0xff]
    %v60 = vld [vmem:[%s2] sm:$0x1]
    %v62 = vlaneseq
    %v63 = vshrl.u32 %v62, 7
    %v64 = vsub.s32 0, %v63
    %v65 = vrot.slane %v60, %v64
    %67 = vmatprep.subr.mxu0 0.0
    %68 = vmatpush1.msra.mxu0 %v44
    %69 = vmatprep.subr.mxu0 0.0
    %70 = vmatpush1.msra.mxu0 %v45
    %71 = vmatprep.subr.mxu0 0.0
    %72 = vmatpush1.msra.mxu0 %v46
    %73 = vmatprep.subr.mxu0 0.0
    %74 = vmatpush1.msra.mxu0 %v47
    %75 = vmatprep.subr.mxu0 0.0
    %76 = vmatpush1.msra.mxu0 %v48
    %77 = vmatprep.subr.mxu0 0.0
    %78 = vmatpush1.msra.mxu0 %v49
    %79 = vmatprep.subr.mxu0 0.0
    %80 = vmatpush1.msra.mxu0 %v50
    %81 = vmatprep.subr.mxu0 0.0
    %82 = vmatpush1.msra.mxu0 %v51
    %83 = vmatprep.subr.mxu0 0.0
    %84 = vmatpush1.msra.mxu0 %v52
    %85 = vmatprep.subr.mxu0 0.0
    %86 = vmatpush1.msra.mxu0 %v53
    %87 = vmatprep.subr.mxu0 0.0
    %88 = vmatpush1.msra.mxu0 %v54
    %89 = vmatprep.subr.mxu0 0.0
    %90 = vmatpush1.msra.mxu0 %v55
    %91 = vmatprep.subr.mxu0 0.0
    %92 = vmatpush1.msra.mxu0 %v56
    %93 = vmatprep.subr.mxu0 0.0
    %94 = vmatpush1.msra.mxu0 %v57
    %95 = vmatprep.subr.mxu0 0.0
    %96 = vmatpush1.msra.mxu0 %v58
    %97 = vmatprep.subr.mxu0 0.0
    %98 = vmatpush1.msra.mxu0 %v59
    %99 = vmatprep.subr.mxu0 0.0
    %100 = vmatpush1.msra.mxu0 0.0
    %101 = vmatprep.subr.mxu0 0.0
    %102 = vmatpush1.msra.mxu0 0.0
    %103 = vmatprep.subr.mxu0 0.0
    %104 = vmatpush1.msra.mxu0 0.0
    %105 = vmatprep.subr.mxu0 0.0
    %106 = vmatpush1.msra.mxu0 0.0
    %107 = vmatprep.subr.mxu0 0.0
    %108 = vmatpush1.msra.mxu0 0.0
    %109 = vmatprep.subr.mxu0 0.0
    %110 = vmatpush1.msra.mxu0 0.0
    %111 = vmatprep.subr.mxu0 0.0
    %112 = vmatpush1.msra.mxu0 0.0
    %113 = vmatprep.subr.mxu0 0.0
    %114 = vmatpush1.msra.mxu0 0.0
    %115 = vmatprep.subr.mxu0 0.0
    %116 = vmatpush1.msra.mxu0 0.0
    %117 = vmatprep.subr.mxu0 0.0
    %118 = vmatpush1.msra.mxu0 0.0
    %119 = vmatprep.subr.mxu0 0.0
    %120 = vmatpush1.msra.mxu0 0.0
    %121 = vmatprep.subr.mxu0 0.0
    %122 = vmatpush1.msra.mxu0 0.0
    %123 = vmatprep.subr.mxu0 0.0
    %124 = vmatpush1.msra.mxu0 0.0
    %125 = vmatprep.subr.mxu0 0.0
    %126 = vmatpush1.msra.mxu0 0.0
    %127 = vmatprep.subr.mxu0 0.0
    %128 = vmatpush1.msra.mxu0 0.0
    %129 = vmatprep.subr.mxu0 0.0
    %130 = vmatpush1.msra.mxu0 0.0
    %131 = vmatprep.mubr.f32.mxu0 0.0
    %132 = vmatmul.mubr.f32.gmra.mrb[0].mxu0 %v43
    %v133 = vpop.f32.mrb[0].mxu0
    %v134 = vadd.f32 %v65, %v133
    %v135 = vpop.f32.mrb[0].mxu0
    %136 = vdwg.mxu0
    %v137 = vsel %vm41, %v134, 0.0
    %v138 = vrot.slane %v137, 4
    %v139 = vadd.f32 %v137, %v138
    %v140 = vrot.slane %v139, 2
    %v141 = vadd.f32 %v139, %v140
    %v142 = vrot.slane %v141, 1
    %v143 = vadd.f32 %v141, %v142
    %v144 = vrcp.pop 8.0
    %v145 = vmul.f32 %v143, %v144
    %v146 = vmul.f32 %v134, %v134
    %v147 = vsel %vm41, %v146, 0.0
    %v148 = vrot.slane %v147, 4
    %v149 = vadd.f32 %v147, %v148
    %v150 = vrot.slane %v149, 2
    %v151 = vadd.f32 %v149, %v150
    %v152 = vrot.slane %v151, 1
    %v153 = vadd.f32 %v151, %v152
    %v154 = vmul.f32 %v153, %v144
    %v155 = vmul.f32 %v145, %v145
    %v156 = vsub.f32 %v154, %v155
    %v157 = vmax.f32 %v156, 0.0
    %v158 = vld [vmem:[%s3] sm:$0x1]
    %v159 = vadd.f32 %v157, 1e-05
    %v160 = vrsqrt.pop %v159
    %v161 = vmul.f32 %v158, %v160
    %v162 = vld [vmem:[%s4] sm:$0x1]
    %v163 = vmul.f32 %v145, %v161
    %v164 = vsub.f32 %v162, %v163
    %v166 = vlaneseq
    %v167 = vshrl.u32 %v166, 7
    %v168 = vsub.s32 0, %v167
    %v169 = vrot.slane %v161, %v168
    %v171 = vmul.f32 %v134, %v169
    %v173 = vlaneseq
    %v174 = vshrl.u32 %v173, 7
    %v175 = vsub.s32 0, %v174
    %v176 = vrot.slane %v164, %v175
    %v178 = vadd.f32 %v171, %v176
    %v179 = vmax.f32 %v178, 0.0
    %181 = vrot.lane.b32.xlu0 %v179, 32
    %v182 = vpop.permute.xlu0 %181
    %vm184 = vcmask 523520
    %185 = vst.msk [vmem:[#allocation2] sm:$0xff] %vm184, %v182
    %v186 = vld [vmem:[#allocation2] sm:$0xff]
    %v187 = vld [vmem:[%s5] sm:$0xff]
    %v188 = vld [vmem:[%s5 + $0x8] sm:$0xff]
    %v189 = vld [vmem:[%s5 + $0x10] sm:$0xff]
    %v190 = vld [vmem:[%s5 + $0x18] sm:$0xff]
    %v191 = vld [vmem:[%s5 + $0x20] sm:$0xff]
    %v192 = vld [vmem:[%s5 + $0x28] sm:$0xff]
    %v193 = vld [vmem:[%s5 + $0x30] sm:$0xff]
    %v194 = vld [vmem:[%s5 + $0x38] sm:$0xff]
    %v195 = vld [vmem:[%s5 + $0x40] sm:$0xff]
    %v196 = vld [vmem:[%s5 + $0x48] sm:$0xff]
    %v197 = vld [vmem:[%s5 + $0x50] sm:$0xff]
    %v198 = vld [vmem:[%s5 + $0x58] sm:$0xff]
    %v199 = vld [vmem:[%s5 + $0x60] sm:$0xff]
    %v200 = vld [vmem:[%s5 + $0x68] sm:$0xff]
    %v201 = vld [vmem:[%s5 + $0x70] sm:$0xff]
    %v202 = vld [vmem:[%s5 + $0x78] sm:$0xff]
    %v203 = vld [vmem:[%s6] sm:$0x1]
    %v205 = vlaneseq
    %v206 = vshrl.u32 %v205, 7
    %v207 = vsub.s32 0, %v206
    %v208 = vrot.slane %v203, %v207
    %210 = vmatprep.subr.mxu0 0.0
    %211 = vmatpush1.msra.mxu0 %v187
    %212 = vmatprep.subr.mxu0 0.0
    %213 = vmatpush1.msra.mxu0 %v188
    %214 = vmatprep.subr.mxu0 0.0
    %215 = vmatpush1.msra.mxu0 %v189
    %216 = vmatprep.subr.mxu0 0.0
    %217 = vmatpush1.msra.mxu0 %v190
    %218 = vmatprep.subr.mxu0 0.0
    %219 = vmatpush1.msra.mxu0 %v191
    %220 = vmatprep.subr.mxu0 0.0
    %221 = vmatpush1.msra.mxu0 %v192
    %222 = vmatprep.subr.mxu0 0.0
    %223 = vmatpush1.msra.mxu0 %v193
    %224 = vmatprep.subr.mxu0 0.0
    %225 = vmatpush1.msra.mxu0 %v194
    %226 = vmatprep.subr.mxu0 0.0
    %227 = vmatpush1.msra.mxu0 %v195
    %228 = vmatprep.subr.mxu0 0.0
    %229 = vmatpush1.msra.mxu0 %v196
    %230 = vmatprep.subr.mxu0 0.0
    %231 = vmatpush1.msra.mxu0 %v197
    %232 = vmatprep.subr.mxu0 0.0
    %233 = vmatpush1.msra.mxu0 %v198
    %234 = vmatprep.subr.mxu0 0.0
    %235 = vmatpush1.msra.mxu0 %v199
    %236 = vmatprep.subr.mxu0 0.0
    %237 = vmatpush1.msra.mxu0 %v200
    %238 = vmatprep.subr.mxu0 0.0
    %239 = vmatpush1.msra.mxu0 %v201
    %240 = vmatprep.subr.mxu0 0.0
    %241 = vmatpush1.msra.mxu0 %v202
    %242 = vmatprep.subr.mxu0 0.0
    %243 = vmatpush1.msra.mxu0 0.0
    %244 = vmatprep.subr.mxu0 0.0
    %245 = vmatpush1.msra.mxu0 0.0
    %246 = vmatprep.subr.mxu0 0.0
    %247 = vmatpush1.msra.mxu0 0.0
    %248 = vmatprep.subr.mxu0 0.0
    %249 = vmatpush1.msra.mxu0 0.0
    %250 = vmatprep.subr.mxu0 0.0
    %251 = vmatpush1.msra.mxu0 0.0
    %252 = vmatprep.subr.mxu0 0.0
    %253 = vmatpush1.msra.mxu0 0.0
    %254 = vmatprep.subr.mxu0 0.0
    %255 = vmatpush1.msra.mxu0 0.0
    %256 = vmatprep.subr.mxu0 0.0
    %257 = vmatpush1.msra.mxu0 0.0
    %258 = vmatprep.subr.mxu0 0.0
    %259 = vmatpush1.msra.mxu0 0.0
    %260 = vmatprep.subr.mxu0 0.0
    %261 = vmatpush1.msra.mxu0 0.0
    %262 = vmatprep.subr.mxu0 0.0
    %263 = vmatpush1.msra.mxu0 0.0
    %264 = vmatprep.subr.mxu0 0.0
    %265 = vmatpush1.msra.mxu0 0.0
    %266 = vmatprep.subr.mxu0 0.0
    %267 = vmatpush1.msra.mxu0 0.0
    %268 = vmatprep.subr.mxu0 0.0
    %269 = vmatpush1.msra.mxu0 0.0
    %270 = vmatprep.subr.mxu0 0.0
    %271 = vmatpush1.msra.mxu0 0.0
    %272 = vmatprep.subr.mxu0 0.0
    %273 = vmatpush1.msra.mxu0 0.0
    %274 = vmatprep.mubr.f32.mxu0 0.0
    %275 = vmatmul.mubr.f32.gmra.mrb[0].mxu0 %v186
    %v276 = vpop.f32.mrb[0].mxu0
    %v277 = vadd.f32 %v208, %v276
    %v278 = vpop.f32.mrb[0].mxu0
    %279 = vdwg.mxu0
    %vm280 = vcmask 523264
    %v281 = vsel %vm280, %v277, 0.0
    %v282 = vrot.slane %v281, 4
    %v283 = vadd.f32 %v281, %v282
    %v284 = vrot.slane %v283, 2
    %v285 = vadd.f32 %v283, %v284
    %v286 = vrot.slane %v285, 1
    %v287 = vadd.f32 %v285, %v286
    %v288 = vmul.f32 %v287, %v144
    %v289 = vmul.f32 %v277, %v277
    %v290 = vsel %vm280, %v289, 0.0
    %v291 = vrot.slane %v290, 4
    %v292 = vadd.f32 %v290, %v291
    %v293 = vrot.slane %v292, 2
    %v294 = vadd.f32 %v292, %v293
    %v295 = vrot.slane %v294, 1
    %v296 = vadd.f32 %v294, %v295
    %v297 = vmul.f32 %v296, %v144
    %v298 = vmul.f32 %v288, %v288
    %v299 = vsub.f32 %v297, %v298
    %v300 = vmax.f32 %v299, 0.0
    %v301 = vld [vmem:[%s7] sm:$0x1]
    %v302 = vadd.f32 %v300, 1e-05
    %v303 = vrsqrt.pop %v302
    %v304 = vmul.f32 %v301, %v303
    %v305 = vld [vmem:[%s8] sm:$0x1]
    %v306 = vmul.f32 %v288, %v304
    %v307 = vsub.f32 %v305, %v306
    %v309 = vlaneseq
    %v310 = vshrl.u32 %v309, 7
    %v311 = vsub.s32 0, %v310
    %v312 = vrot.slane %v304, %v311
    %v314 = vmul.f32 %v277, %v312
    %v316 = vlaneseq
    %v317 = vshrl.u32 %v316, 7
    %v318 = vsub.s32 0, %v317
    %v319 = vrot.slane %v307, %v318
    %v321 = vadd.f32 %v314, %v319
    %v322 = vmax.f32 %v321, 0.0
    %324 = vrot.lane.b32.xlu0 %v322, 64
    %v325 = vpop.permute.xlu0 %324
    %vm327 = vcmask 1048064
    %328 = vst.msk [vmem:[#allocation2] sm:$0xff] %vm327, %v325
    %v329 = vld [vmem:[#allocation2] sm:$0xff]
    %v330 = vld [vmem:[%s9] sm:$0xff]
    %v331 = vld [vmem:[%s9 + $0x8] sm:$0xff]
    %v332 = vld [vmem:[%s9 + $0x10] sm:$0xff]
    %v333 = vld [vmem:[%s9 + $0x18] sm:$0xff]
    %v334 = vld [vmem:[%s9 + $0x20] sm:$0xff]
    %v335 = vld [vmem:[%s9 + $0x28] sm:$0xff]
    %v336 = vld [vmem:[%s9 + $0x30] sm:$0xff]
    %v337 = vld [vmem:[%s9 + $0x38] sm:$0xff]
    %v338 = vld [vmem:[%s9 + $0x40] sm:$0xff]
    %v339 = vld [vmem:[%s9 + $0x48] sm:$0xff]
    %v340 = vld [vmem:[%s9 + $0x50] sm:$0xff]
    %v341 = vld [vmem:[%s9 + $0x58] sm:$0xff]
    %v342 = vld [vmem:[%s9 + $0x60] sm:$0xff]
    %v343 = vld [vmem:[%s9 + $0x68] sm:$0xff]
    %v344 = vld [vmem:[%s9 + $0x70] sm:$0xff]
    %v345 = vld [vmem:[%s9 + $0x78] sm:$0xff]
    %v346 = vld [vmem:[%s10] sm:$0x1]
    %v348 = vlaneseq
    %v349 = vshrl.u32 %v348, 7
    %v350 = vsub.s32 0, %v349
    %v351 = vrot.slane %v346, %v350
    %353 = vmatprep.subr.mxu0 0.0
    %354 = vmatpush1.msra.mxu0 %v330
    %355 = vmatprep.subr.mxu0 0.0
    %356 = vmatpush1.msra.mxu0 %v331
    %357 = vmatprep.subr.mxu0 0.0
    %358 = vmatpush1.msra.mxu0 %v332
    %359 = vmatprep.subr.mxu0 0.0
    %360 = vmatpush1.msra.mxu0 %v333
    %361 = vmatprep.subr.mxu0 0.0
    %362 = vmatpush1.msra.mxu0 %v334
    %363 = vmatprep.subr.mxu0 0.0
    %364 = vmatpush1.msra.mxu0 %v335
    %365 = vmatprep.subr.mxu0 0.0
    %366 = vmatpush1.msra.mxu0 %v336
    %367 = vmatprep.subr.mxu0 0.0
    %368 = vmatpush1.msra.mxu0 %v337
    %369 = vmatprep.subr.mxu0 0.0
    %370 = vmatpush1.msra.mxu0 %v338
    %371 = vmatprep.subr.mxu0 0.0
    %372 = vmatpush1.msra.mxu0 %v339
    %373 = vmatprep.subr.mxu0 0.0
    %374 = vmatpush1.msra.mxu0 %v340
    %375 = vmatprep.subr.mxu0 0.0
    %376 = vmatpush1.msra.mxu0 %v341
    %377 = vmatprep.subr.mxu0 0.0
    %378 = vmatpush1.msra.mxu0 %v342
    %379 = vmatprep.subr.mxu0 0.0
    %380 = vmatpush1.msra.mxu0 %v343
    %381 = vmatprep.subr.mxu0 0.0
    %382 = vmatpush1.msra.mxu0 %v344
    %383 = vmatprep.subr.mxu0 0.0
    %384 = vmatpush1.msra.mxu0 %v345
    %385 = vmatprep.subr.mxu0 0.0
    %386 = vmatpush1.msra.mxu0 0.0
    %387 = vmatprep.subr.mxu0 0.0
    %388 = vmatpush1.msra.mxu0 0.0
    %389 = vmatprep.subr.mxu0 0.0
    %390 = vmatpush1.msra.mxu0 0.0
    %391 = vmatprep.subr.mxu0 0.0
    %392 = vmatpush1.msra.mxu0 0.0
    %393 = vmatprep.subr.mxu0 0.0
    %394 = vmatpush1.msra.mxu0 0.0
    %395 = vmatprep.subr.mxu0 0.0
    %396 = vmatpush1.msra.mxu0 0.0
    %397 = vmatprep.subr.mxu0 0.0
    %398 = vmatpush1.msra.mxu0 0.0
    %399 = vmatprep.subr.mxu0 0.0
    %400 = vmatpush1.msra.mxu0 0.0
    %401 = vmatprep.subr.mxu0 0.0
    %402 = vmatpush1.msra.mxu0 0.0
    %403 = vmatprep.subr.mxu0 0.0
    %404 = vmatpush1.msra.mxu0 0.0
    %405 = vmatprep.subr.mxu0 0.0
    %406 = vmatpush1.msra.mxu0 0.0
    %407 = vmatprep.subr.mxu0 0.0
    %408 = vmatpush1.msra.mxu0 0.0
    %409 = vmatprep.subr.mxu0 0.0
    %410 = vmatpush1.msra.mxu0 0.0
    %411 = vmatprep.subr.mxu0 0.0
    %412 = vmatpush1.msra.mxu0 0.0
    %413 = vmatprep.subr.mxu0 0.0
    %414 = vmatpush1.msra.mxu0 0.0
    %415 = vmatprep.subr.mxu0 0.0
    %416 = vmatpush1.msra.mxu0 0.0
    %417 = vmatprep.mubr.f32.mxu0 0.0
    %418 = vmatmul.mubr.f32.gmra.mrb[0].mxu0 %v329
    %v419 = vpop.f32.mrb[0].mxu0
    %v420 = vadd.f32 %v351, %v419
    %v421 = vpop.f32.mrb[0].mxu0
    %422 = vdwg.mxu0
    %423 = vst [vmem:[#allocation3] sm:$0xff] %v420
    // Predicated region
    $region46: #{tpu_custom_call.1} parent=1 // pred_check
      _
    $region47: #{tpu_custom_call.1} parent=1 // pred_check_branch
      %425 = sbr.rel (0) target = $region49
    $region48: #{tpu_custom_call.1} parent=1 // pred_region
      %s427 = ssub.s32 128, 128
      %428 = vsyncadd [#allocation4], %s427
      %s430 = sshll.u32 [#allocation3], 4
      %s431 = int_to_ptr.vmem [resolvable:$true] %s430
      %433 = dma.vmem_to_hbm [thread:$0]  %s431, 128, %s11, [#allocation4]
    $region49: #{tpu_custom_call.1} parent=1 // pred_fallthru
      _
    // Predicated region
    $region50: #{tpu_custom_call.1} parent=1 // pred_check
      _
    $region51: #{tpu_custom_call.1} parent=1 // pred_check_branch
      %435 = sbr.rel (0) target = $region53
    $region52: #{tpu_custom_call.1} parent=1 // pred_region
      %436 = dma.done [#allocation4], 128
    $region53: #{tpu_custom_call.1} parent=1 // pred_fallthru
      _
    %437 = vsyncpa [#allocation4], 1

</llo_original>
